<compile_context>
chip_gen: v5e
topology: v5e:2x2
jax: 0.10.0
libtpu: 0.0.40
codegen_flags: <defaults>
</compile_context>

<pallas_src>
import jax
import jax.numpy as jnp
from jax.experimental import pallas as pl
from jax.experimental.pallas import tpu as pltpu


# --------------------------------------------------------------------------
# Kernel: per batch element -> modulated 1x1 conv + prev_rgb + bilinear x2
# --------------------------------------------------------------------------
def _rgb_block_kernel(wmod_ref, x_ref, prev_ref, ah_ref, awt_ref, o_ref):
    b = pl.program_id(0)
    cin = x_ref.shape[1]
    cout = o_ref.shape[1]

    ah = ah_ref[...]        # (Ho, H)  row-upsampling matrix
    awt = awt_ref[...]      # (W, Wo)  column-upsampling matrix (transposed)

    for c in range(cout):
        # modulated 1x1 conv (+ residual) for output channel c, on (H, W) planes
        acc = prev_ref[0, c]
        for k in range(cin):
            w = wmod_ref[b, c * cin + k]          # scalar read from SMEM
            acc = acc + w * x_ref[0, k]
        # bilinear x2 upsample as two MXU matmuls: y = Ah @ acc @ Aw^T
        t = jnp.dot(ah, acc, preferred_element_type=jnp.float32)    # (Ho, W)
        y = jnp.dot(t, awt, preferred_element_type=jnp.float32)     # (Ho, Wo)
        o_ref[0, c] = y.astype(o_ref.dtype)


# --------------------------------------------------------------------------
# Wrapper
# --------------------------------------------------------------------------
def _bilinear_up_matrix(n):
    """(2n, n) matrix for 1-D bilinear x2 upsampling, align_corners=False."""
    dst = jnp.arange(2 * n)
    src = jnp.clip((dst.astype(jnp.float32) + 0.5) / 2.0 - 0.5, 0.0, float(n - 1))
    i0 = jnp.floor(src).astype(jnp.int32)
    i1 = jnp.minimum(i0 + 1, n - 1)
    w1 = src - i0.astype(jnp.float32)
    m = jnp.zeros((2 * n, n), jnp.float32)
    m = m.at[dst, i0].add(1.0 - w1)
    m = m.at[dst, i1].add(w1)
    return m


def rgb_block_forward(x, prev_rgb, istyle, params, upsample=True):
    B, Cin, H, W = x.shape
    Cout = params["w_conv"].shape[0]
    x = x.astype(jnp.float32)

    # Tiny per-sample quantities (a few dozen scalars) computed once in XLA:
    # style linear + weight modulation.  Negligible bytes; the heavy tensors
    # (x, prev_rgb, output) never leave the fused kernel.
    style = istyle.astype(jnp.float32) @ params["w_style"].T + params["b_style"]  # (B, Cin)
    wmod = params["w_conv"][None, :, :] * (style[:, None, :] + 1.0)               # (B, Cout, Cin)
    wmod_flat = wmod.reshape(B, Cout * Cin).astype(jnp.float32)

    if prev_rgb is None:
        prev = jnp.zeros((B, Cout, H, W), jnp.float32)
    else:
        prev = prev_rgb.astype(jnp.float32)

    if upsample:
        ah = _bilinear_up_matrix(H)            # (2H, H)
        awt = _bilinear_up_matrix(W).T         # (W, 2W)
    else:
        ah = jnp.eye(H, dtype=jnp.float32)
        awt = jnp.eye(W, dtype=jnp.float32)
    Ho, Wo = ah.shape[0], awt.shape[1]

    out = pl.pallas_call(
        _rgb_block_kernel,
        out_shape=jax.ShapeDtypeStruct((B, Cout, Ho, Wo), jnp.float32),
        grid=(B,),
        in_specs=[
            pl.BlockSpec(memory_space=pltpu.MemorySpace.SMEM),        # wmod (B, Cout*Cin)
            pl.BlockSpec((1, Cin, H, W), lambda b: (b, 0, 0, 0)),     # x
            pl.BlockSpec((1, Cout, H, W), lambda b: (b, 0, 0, 0)),    # prev_rgb
            pl.BlockSpec((Ho, H), lambda b: (0, 0)),                  # Ah
            pl.BlockSpec((W, Wo), lambda b: (0, 0)),                  # Aw^T
        ],
        out_specs=pl.BlockSpec((1, Cout, Ho, Wo), lambda b: (b, 0, 0, 0)),
        compiler_params=pltpu.CompilerParams(
            dimension_semantics=("parallel",),
            vmem_limit_bytes=32 * 1024 * 1024,
        ),
    )(wmod_flat, x, prev, ah, awt)
    return out


# --------------------------------------------------------------------------
# Deterministic synthetic parameters + pure-JAX reference for validation
# --------------------------------------------------------------------------
def init_params(key, latent_dim, cin, rgba=False):
    cout = 4 if rgba else 3
    k1, k2, k3 = jax.random.split(key, 3)
    return {
        "w_style": 0.2 * jax.random.normal(k1, (cin, latent_dim), jnp.float32),  # nn.Linear weight
        "b_style": 0.1 * jax.random.normal(k2, (cin,), jnp.float32),
        "w_conv": 0.3 * jax.random.normal(k3, (cout, cin), jnp.float32),          # Conv2DMod 1x1 weight
    }


def _upsample_bilinear2x_ref(x):
    """Bilinear x2 upsample, PyTorch align_corners=False semantics (gather form)."""
    def up_axis(a, axis):
        n = a.shape[axis]
        dst = jnp.arange(2 * n)
        src = jnp.clip((dst.astype(jnp.float32) + 0.5) / 2.0 - 0.5, 0.0, float(n - 1))
        i0 = jnp.floor(src).astype(jnp.int32)
        i1 = jnp.minimum(i0 + 1, n - 1)
        w1 = src - i0.astype(jnp.float32)
        a0 = jnp.take(a, i0, axis=axis)
        a1 = jnp.take(a, i1, axis=axis)
        shp = [1] * a.ndim
        shp[axis] = 2 * n
        w1 = w1.reshape(shp)
        return a0 * (1.0 - w1) + a1 * w1

    return up_axis(up_axis(x, 2), 3)


def reference_forward(x, prev_rgb, istyle, params, upsample=True):
    x = x.astype(jnp.float32)
    style = istyle.astype(jnp.float32) @ params["w_style"].T + params["b_style"]
    weights = params["w_conv"][None, :, :] * (style[:, None, :] + 1.0)     # (B, Cout, Cin)
    out = jnp.einsum("boc,bchw->bohw", weights, x)
    if prev_rgb is not None:
        out = out + prev_rgb.astype(jnp.float32)
    if upsample:
        out = _upsample_bilinear2x_ref(out)
    return out


if __name__ == "__main__":
    key = jax.random.PRNGKey(0)
    kx, kprev, ks, kp = jax.random.split(key, 4)

    B, Cin, H, W, L = 2, 4, 16, 16, 8
    Cout = 3

    x = jax.random.normal(kx, (B, Cin, H, W), jnp.float32)
    prev_rgb = jax.random.normal(kprev, (B, Cout, H, W), jnp.float32)
    istyle = jax.random.normal(ks, (B, L), jnp.float32)
    params = init_params(kp, L, Cin, rgba=False)

    out = rgb_block_forward(x, prev_rgb, istyle, params, upsample=True)
    out = jax.block_until_ready(out)

    ref = reference_forward(x, prev_rgb, istyle, params, upsample=True)
    assert out.shape == (B, Cout, 2 * H, 2 * W), out.shape
    err = float(jnp.max(jnp.abs(out - ref)))
    # Typical error is ~1e-6 (pure f32 path); the bound only allows headroom for
    # MXU f32 multi-pass rounding differences vs the XLA gather-based reference.
    assert err < 2e-2, f"max abs err {err}"

    print("KERNEL_OK")
</pallas_src>

<mosaic_0001>
module attributes {stable_mosaic.version = 11 : i64} {
  func.func @_rgb_block_kernel(%arg0: i32, %arg1: memref<2x12xf32, #tpu.memory_space<smem>>, %arg2: memref<1x4x16x16xf32, #tpu.memory_space<vmem>>, %arg3: memref<1x3x16x16xf32, #tpu.memory_space<vmem>>, %arg4: memref<32x16xf32, #tpu.memory_space<vmem>>, %arg5: memref<16x32xf32, #tpu.memory_space<vmem>>, %arg6: memref<1x3x32x32xf32, #tpu.memory_space<vmem>>) attributes {dimension_semantics = [#tpu.dimension_semantics<parallel>], iteration_bounds = array<i64: 2>, scalar_prefetch = 0 : i64, scratch_operands = 0 : i64, tpu.core_type = #tpu.core_type<tc>, window_params = [{transform_indices = @transform_0, window_bounds = array<i64: 2, 12>}, {transform_indices = @transform_1, window_bounds = array<i64: 1, 4, 16, 16>}, {transform_indices = @transform_2, window_bounds = array<i64: 1, 3, 16, 16>}, {pipeline_mode = #tpu.pipeline_mode<synchronous>, transform_indices = @transform_3, window_bounds = array<i64: 32, 16>}, {pipeline_mode = #tpu.pipeline_mode<synchronous>, transform_indices = @transform_4, window_bounds = array<i64: 16, 32>}, {transform_indices = @transform_5, window_bounds = array<i64: 1, 3, 32, 32>}]} {
    %c0 = arith.constant 0 : index
    %c0_0 = arith.constant 0 : index
    %0 = vector.load %arg4[%c0, %c0_0] : memref<32x16xf32, #tpu.memory_space<vmem>>, vector<32x16xf32>
    %c0_1 = arith.constant 0 : index
    %c0_2 = arith.constant 0 : index
    %1 = vector.load %arg5[%c0_1, %c0_2] : memref<16x32xf32, #tpu.memory_space<vmem>>, vector<16x32xf32>
    %c0_3 = arith.constant 0 : index
    %c0_4 = arith.constant 0 : index
    %c0_5 = arith.constant 0 : index
    %c0_6 = arith.constant 0 : index
    %2 = vector.load %arg3[%c0_3, %c0_4, %c0_5, %c0_6] : memref<1x3x16x16xf32, #tpu.memory_space<vmem>>, vector<1x1x16x16xf32>
    %3 = vector.shape_cast %2 : vector<1x1x16x16xf32> to vector<16x16xf32>
    %4 = arith.index_cast %arg0 : i32 to index
    %c0_7 = arith.constant 0 : index
    %5 = memref.load %arg1[%4, %c0_7] : memref<2x12xf32, #tpu.memory_space<smem>>
    %c0_8 = arith.constant 0 : index
    %c0_9 = arith.constant 0 : index
    %c0_10 = arith.constant 0 : index
    %c0_11 = arith.constant 0 : index
    %6 = vector.load %arg2[%c0_8, %c0_9, %c0_10, %c0_11] : memref<1x4x16x16xf32, #tpu.memory_space<vmem>>, vector<1x1x16x16xf32>
    %7 = vector.shape_cast %6 : vector<1x1x16x16xf32> to vector<16x16xf32>
    %8 = vector.broadcast %5 : f32 to vector<16x16xf32>
    %9 = arith.mulf %8, %7 : vector<16x16xf32>
    %10 = arith.addf %3, %9 : vector<16x16xf32>
    %11 = arith.index_cast %arg0 : i32 to index
    %c1 = arith.constant 1 : index
    %12 = memref.load %arg1[%11, %c1] : memref<2x12xf32, #tpu.memory_space<smem>>
    %c0_12 = arith.constant 0 : index
    %c1_13 = arith.constant 1 : index
    %c0_14 = arith.constant 0 : index
    %c0_15 = arith.constant 0 : index
    %13 = vector.load %arg2[%c0_12, %c1_13, %c0_14, %c0_15] : memref<1x4x16x16xf32, #tpu.memory_space<vmem>>, vector<1x1x16x16xf32>
    %14 = vector.shape_cast %13 : vector<1x1x16x16xf32> to vector<16x16xf32>
    %15 = vector.broadcast %12 : f32 to vector<16x16xf32>
    %16 = arith.mulf %15, %14 : vector<16x16xf32>
    %17 = arith.addf %10, %16 : vector<16x16xf32>
    %18 = arith.index_cast %arg0 : i32 to index
    %c2 = arith.constant 2 : index
    %19 = memref.load %arg1[%18, %c2] : memref<2x12xf32, #tpu.memory_space<smem>>
    %c0_16 = arith.constant 0 : index
    %c2_17 = arith.constant 2 : index
    %c0_18 = arith.constant 0 : index
    %c0_19 = arith.constant 0 : index
    %20 = vector.load %arg2[%c0_16, %c2_17, %c0_18, %c0_19] : memref<1x4x16x16xf32, #tpu.memory_space<vmem>>, vector<1x1x16x16xf32>
    %21 = vector.shape_cast %20 : vector<1x1x16x16xf32> to vector<16x16xf32>
    %22 = vector.broadcast %19 : f32 to vector<16x16xf32>
    %23 = arith.mulf %22, %21 : vector<16x16xf32>
    %24 = arith.addf %17, %23 : vector<16x16xf32>
    %25 = arith.index_cast %arg0 : i32 to index
    %c3 = arith.constant 3 : index
    %26 = memref.load %arg1[%25, %c3] : memref<2x12xf32, #tpu.memory_space<smem>>
    %c0_20 = arith.constant 0 : index
    %c3_21 = arith.constant 3 : index
    %c0_22 = arith.constant 0 : index
    %c0_23 = arith.constant 0 : index
    %27 = vector.load %arg2[%c0_20, %c3_21, %c0_22, %c0_23] : memref<1x4x16x16xf32, #tpu.memory_space<vmem>>, vector<1x1x16x16xf32>
    %28 = vector.shape_cast %27 : vector<1x1x16x16xf32> to vector<16x16xf32>
    %29 = vector.broadcast %26 : f32 to vector<16x16xf32>
    %30 = arith.mulf %29, %28 : vector<16x16xf32>
    %31 = arith.addf %24, %30 : vector<16x16xf32>
    %cst = arith.constant dense<0.000000e+00> : vector<32x16xf32>
    %32 = tpu.matmul %0, %31, %cst {dimension_numbers = #tpu.dot_dimension_numbers<[1], [0], [0], [1], [0, 0, 1, 1], [], []>} : vector<32x16xf32>, vector<16x16xf32>, vector<32x16xf32> -> vector<32x16xf32>
    %cst_24 = arith.constant dense<0.000000e+00> : vector<32x32xf32>
    %33 = tpu.matmul %32, %1, %cst_24 {dimension_numbers = #tpu.dot_dimension_numbers<[1], [0], [0], [1], [0, 0, 1, 1], [], []>} : vector<32x16xf32>, vector<16x32xf32>, vector<32x32xf32> -> vector<32x32xf32>
    %c0_25 = arith.constant 0 : index
    %c0_26 = arith.constant 0 : index
    %c0_27 = arith.constant 0 : index
    %c0_28 = arith.constant 0 : index
    %34 = vector.load %arg6[%c0_25, %c0_26, %c0_27, %c0_28] : memref<1x3x32x32xf32, #tpu.memory_space<vmem>>, vector<1x1x32x32xf32>
    %35 = vector.shape_cast %34 : vector<1x1x32x32xf32> to vector<32x32xf32>
    %36 = vector.shape_cast %33 : vector<32x32xf32> to vector<1x1x32x32xf32>
    tpu.vector_store %arg6[%c0_25, %c0_26, %c0_27, %c0_28], %36 {strides = array<i32>} : memref<1x3x32x32xf32, #tpu.memory_space<vmem>>, vector<1x1x32x32xf32>,
    %c0_29 = arith.constant 0 : index
    %c1_30 = arith.constant 1 : index
    %c0_31 = arith.constant 0 : index
    %c0_32 = arith.constant 0 : index
    %37 = vector.load %arg3[%c0_29, %c1_30, %c0_31, %c0_32] : memref<1x3x16x16xf32, #tpu.memory_space<vmem>>, vector<1x1x16x16xf32>
    %38 = vector.shape_cast %37 : vector<1x1x16x16xf32> to vector<16x16xf32>
    %39 = arith.index_cast %arg0 : i32 to index
    %c4 = arith.constant 4 : index
    %40 = memref.load %arg1[%39, %c4] : memref<2x12xf32, #tpu.memory_space<smem>>
    %c0_33 = arith.constant 0 : index
    %c0_34 = arith.constant 0 : index
    %c0_35 = arith.constant 0 : index
    %c0_36 = arith.constant 0 : index
    %41 = vector.load %arg2[%c0_33, %c0_34, %c0_35, %c0_36] : memref<1x4x16x16xf32, #tpu.memory_space<vmem>>, vector<1x1x16x16xf32>
    %42 = vector.shape_cast %41 : vector<1x1x16x16xf32> to vector<16x16xf32>
    %43 = vector.broadcast %40 : f32 to vector<16x16xf32>
    %44 = arith.mulf %43, %42 : vector<16x16xf32>
    %45 = arith.addf %38, %44 : vector<16x16xf32>
    %46 = arith.index_cast %arg0 : i32 to index
    %c5 = arith.constant 5 : index
    %47 = memref.load %arg1[%46, %c5] : memref<2x12xf32, #tpu.memory_space<smem>>
    %c0_37 = arith.constant 0 : index
    %c1_38 = arith.constant 1 : index
    %c0_39 = arith.constant 0 : index
    %c0_40 = arith.constant 0 : index
    %48 = vector.load %arg2[%c0_37, %c1_38, %c0_39, %c0_40] : memref<1x4x16x16xf32, #tpu.memory_space<vmem>>, vector<1x1x16x16xf32>
    %49 = vector.shape_cast %48 : vector<1x1x16x16xf32> to vector<16x16xf32>
    %50 = vector.broadcast %47 : f32 to vector<16x16xf32>
    %51 = arith.mulf %50, %49 : vector<16x16xf32>
    %52 = arith.addf %45, %51 : vector<16x16xf32>
    %53 = arith.index_cast %arg0 : i32 to index
    %c6 = arith.constant 6 : index
    %54 = memref.load %arg1[%53, %c6] : memref<2x12xf32, #tpu.memory_space<smem>>
    %c0_41 = arith.constant 0 : index
    %c2_42 = arith.constant 2 : index
    %c0_43 = arith.constant 0 : index
    %c0_44 = arith.constant 0 : index
    %55 = vector.load %arg2[%c0_41, %c2_42, %c0_43, %c0_44] : memref<1x4x16x16xf32, #tpu.memory_space<vmem>>, vector<1x1x16x16xf32>
    %56 = vector.shape_cast %55 : vector<1x1x16x16xf32> to vector<16x16xf32>
    %57 = vector.broadcast %54 : f32 to vector<16x16xf32>
    %58 = arith.mulf %57, %56 : vector<16x16xf32>
    %59 = arith.addf %52, %58 : vector<16x16xf32>
    %60 = arith.index_cast %arg0 : i32 to index
    %c7 = arith.constant 7 : index
    %61 = memref.load %arg1[%60, %c7] : memref<2x12xf32, #tpu.memory_space<smem>>
    %c0_45 = arith.constant 0 : index
    %c3_46 = arith.constant 3 : index
    %c0_47 = arith.constant 0 : index
    %c0_48 = arith.constant 0 : index
    %62 = vector.load %arg2[%c0_45, %c3_46, %c0_47, %c0_48] : memref<1x4x16x16xf32, #tpu.memory_space<vmem>>, vector<1x1x16x16xf32>
    %63 = vector.shape_cast %62 : vector<1x1x16x16xf32> to vector<16x16xf32>
    %64 = vector.broadcast %61 : f32 to vector<16x16xf32>
    %65 = arith.mulf %64, %63 : vector<16x16xf32>
    %66 = arith.addf %59, %65 : vector<16x16xf32>
    %cst_49 = arith.constant dense<0.000000e+00> : vector<32x16xf32>
    %67 = tpu.matmul %0, %66, %cst_49 {dimension_numbers = #tpu.dot_dimension_numbers<[1], [0], [0], [1], [0, 0, 1, 1], [], []>} : vector<32x16xf32>, vector<16x16xf32>, vector<32x16xf32> -> vector<32x16xf32>
    %cst_50 = arith.constant dense<0.000000e+00> : vector<32x32xf32>
    %68 = tpu.matmul %67, %1, %cst_50 {dimension_numbers = #tpu.dot_dimension_numbers<[1], [0], [0], [1], [0, 0, 1, 1], [], []>} : vector<32x16xf32>, vector<16x32xf32>, vector<32x32xf32> -> vector<32x32xf32>
    %c0_51 = arith.constant 0 : index
    %c1_52 = arith.constant 1 : index
    %c0_53 = arith.constant 0 : index
    %c0_54 = arith.constant 0 : index
    %69 = vector.load %arg6[%c0_51, %c1_52, %c0_53, %c0_54] : memref<1x3x32x32xf32, #tpu.memory_space<vmem>>, vector<1x1x32x32xf32>
    %70 = vector.shape_cast %69 : vector<1x1x32x32xf32> to vector<32x32xf32>
    %71 = vector.shape_cast %68 : vector<32x32xf32> to vector<1x1x32x32xf32>
    tpu.vector_store %arg6[%c0_51, %c1_52, %c0_53, %c0_54], %71 {strides = array<i32>} : memref<1x3x32x32xf32, #tpu.memory_space<vmem>>, vector<1x1x32x32xf32>,
    %c0_55 = arith.constant 0 : index
    %c2_56 = arith.constant 2 : index
    %c0_57 = arith.constant 0 : index
    %c0_58 = arith.constant 0 : index
    %72 = vector.load %arg3[%c0_55, %c2_56, %c0_57, %c0_58] : memref<1x3x16x16xf32, #tpu.memory_space<vmem>>, vector<1x1x16x16xf32>
    %73 = vector.shape_cast %72 : vector<1x1x16x16xf32> to vector<16x16xf32>
    %74 = arith.index_cast %arg0 : i32 to index
    %c8 = arith.constant 8 : index
    %75 = memref.load %arg1[%74, %c8] : memref<2x12xf32, #tpu.memory_space<smem>>
    %c0_59 = arith.constant 0 : index
    %c0_60 = arith.constant 0 : index
    %c0_61 = arith.constant 0 : index
    %c0_62 = arith.constant 0 : index
    %76 = vector.load %arg2[%c0_59, %c0_60, %c0_61, %c0_62] : memref<1x4x16x16xf32, #tpu.memory_space<vmem>>, vector<1x1x16x16xf32>
    %77 = vector.shape_cast %76 : vector<1x1x16x16xf32> to vector<16x16xf32>
    %78 = vector.broadcast %75 : f32 to vector<16x16xf32>
    %79 = arith.mulf %78, %77 : vector<16x16xf32>
    %80 = arith.addf %73, %79 : vector<16x16xf32>
    %81 = arith.index_cast %arg0 : i32 to index
    %c9 = arith.constant 9 : index
    %82 = memref.load %arg1[%81, %c9] : memref<2x12xf32, #tpu.memory_space<smem>>
    %c0_63 = arith.constant 0 : index
    %c1_64 = arith.constant 1 : index
    %c0_65 = arith.constant 0 : index
    %c0_66 = arith.constant 0 : index
    %83 = vector.load %arg2[%c0_63, %c1_64, %c0_65, %c0_66] : memref<1x4x16x16xf32, #tpu.memory_space<vmem>>, vector<1x1x16x16xf32>
    %84 = vector.shape_cast %83 : vector<1x1x16x16xf32> to vector<16x16xf32>
    %85 = vector.broadcast %82 : f32 to vector<16x16xf32>
    %86 = arith.mulf %85, %84 : vector<16x16xf32>
    %87 = arith.addf %80, %86 : vector<16x16xf32>
    %88 = arith.index_cast %arg0 : i32 to index
    %c10 = arith.constant 10 : index
    %89 = memref.load %arg1[%88, %c10] : memref<2x12xf32, #tpu.memory_space<smem>>
    %c0_67 = arith.constant 0 : index
    %c2_68 = arith.constant 2 : index
    %c0_69 = arith.constant 0 : index
    %c0_70 = arith.constant 0 : index
    %90 = vector.load %arg2[%c0_67, %c2_68, %c0_69, %c0_70] : memref<1x4x16x16xf32, #tpu.memory_space<vmem>>, vector<1x1x16x16xf32>
    %91 = vector.shape_cast %90 : vector<1x1x16x16xf32> to vector<16x16xf32>
    %92 = vector.broadcast %89 : f32 to vector<16x16xf32>
    %93 = arith.mulf %92, %91 : vector<16x16xf32>
    %94 = arith.addf %87, %93 : vector<16x16xf32>
    %95 = arith.index_cast %arg0 : i32 to index
    %c11 = arith.constant 11 : index
    %96 = memref.load %arg1[%95, %c11] : memref<2x12xf32, #tpu.memory_space<smem>>
    %c0_71 = arith.constant 0 : index
    %c3_72 = arith.constant 3 : index
    %c0_73 = arith.constant 0 : index
    %c0_74 = arith.constant 0 : index
    %97 = vector.load %arg2[%c0_71, %c3_72, %c0_73, %c0_74] : memref<1x4x16x16xf32, #tpu.memory_space<vmem>>, vector<1x1x16x16xf32>
    %98 = vector.shape_cast %97 : vector<1x1x16x16xf32> to vector<16x16xf32>
    %99 = vector.broadcast %96 : f32 to vector<16x16xf32>
    %100 = arith.mulf %99, %98 : vector<16x16xf32>
    %101 = arith.addf %94, %100 : vector<16x16xf32>
    %cst_75 = arith.constant dense<0.000000e+00> : vector<32x16xf32>
    %102 = tpu.matmul %0, %101, %cst_75 {dimension_numbers = #tpu.dot_dimension_numbers<[1], [0], [0], [1], [0, 0, 1, 1], [], []>} : vector<32x16xf32>, vector<16x16xf32>, vector<32x16xf32> -> vector<32x16xf32>
    %cst_76 = arith.constant dense<0.000000e+00> : vector<32x32xf32>
    %103 = tpu.matmul %102, %1, %cst_76 {dimension_numbers = #tpu.dot_dimension_numbers<[1], [0], [0], [1], [0, 0, 1, 1], [], []>} : vector<32x16xf32>, vector<16x32xf32>, vector<32x32xf32> -> vector<32x32xf32>
    %c0_77 = arith.constant 0 : index
    %c2_78 = arith.constant 2 : index
    %c0_79 = arith.constant 0 : index
    %c0_80 = arith.constant 0 : index
    %104 = vector.load %arg6[%c0_77, %c2_78, %c0_79, %c0_80] : memref<1x3x32x32xf32, #tpu.memory_space<vmem>>, vector<1x1x32x32xf32>
    %105 = vector.shape_cast %104 : vector<1x1x32x32xf32> to vector<32x32xf32>
    %106 = vector.shape_cast %103 : vector<32x32xf32> to vector<1x1x32x32xf32>
    tpu.vector_store %arg6[%c0_77, %c2_78, %c0_79, %c0_80], %106 {strides = array<i32>} : memref<1x3x32x32xf32, #tpu.memory_space<vmem>>, vector<1x1x32x32xf32>,
    return
  }
  func.func @transform_0(%arg0: i32) -> (i32, i32) {
    %c0_i32 = arith.constant 0 : i32
    %c0_i32_0 = arith.constant 0 : i32
    %c0_i32_1 = arith.constant 0 : i32
    return %c0_i32, %c0_i32_0 : i32, i32
  }
  func.func @transform_1(%arg0: i32) -> (i32, i32, i32, i32) {
    %c0_i32 = arith.constant 0 : i32
    %c0_i32_0 = arith.constant 0 : i32
    %c0_i32_1 = arith.constant 0 : i32
    %c0_i32_2 = arith.constant 0 : i32
    return %arg0, %c0_i32, %c0_i32_0, %c0_i32_1 : i32, i32, i32, i32
  }
  func.func @transform_2(%arg0: i32) -> (i32, i32, i32, i32) {
    %c0_i32 = arith.constant 0 : i32
    %c0_i32_0 = arith.constant 0 : i32
    %c0_i32_1 = arith.constant 0 : i32
    %c0_i32_2 = arith.constant 0 : i32
    return %arg0, %c0_i32, %c0_i32_0, %c0_i32_1 : i32, i32, i32, i32
  }
  func.func @transform_3(%arg0: i32) -> (i32, i32) {
    %c0_i32 = arith.constant 0 : i32
    %c0_i32_0 = arith.constant 0 : i32
    %c0_i32_1 = arith.constant 0 : i32
    return %c0_i32, %c0_i32_0 : i32, i32
  }
  func.func @transform_4(%arg0: i32) -> (i32, i32) {
    %c0_i32 = arith.constant 0 : i32
    %c0_i32_0 = arith.constant 0 : i32
    %c0_i32_1 = arith.constant 0 : i32
    return %c0_i32, %c0_i32_0 : i32, i32
  }
  func.func @transform_5(%arg0: i32) -> (i32, i32, i32, i32) {
    %c0_i32 = arith.constant 0 : i32
    %c0_i32_0 = arith.constant 0 : i32
    %c0_i32_1 = arith.constant 0 : i32
    %c0_i32_2 = arith.constant 0 : i32
    return %arg0, %c0_i32, %c0_i32_0, %c0_i32_1 : i32, i32, i32, i32
  }
}

</mosaic_0001>

<llo_original>
// kernel: tpu_custom_call.1
$region0: #{tpu_custom_call.1}
  #allocation0 [shape = 'u32[]', space=smem, size = 0x4, offset = 0x4, fixed_abs, tag = 'smem constant byte address 0x4 - core index']
  #allocation1 [shape = 'u32[72,128]{1,0:T(1,128)}', space=vmem, size = 0x9000, scoped, tag = 'internal scratch']
  %s0 = inlined_call_operand.vmem [shape: f32[2,12], index: 0, kind: input, shape index: {}]
  %s1 = inlined_call_operand.hbm [shape: f32[2,4,16,16], index: 1, kind: input, shape index: {}]
  %s2 = inlined_call_operand.hbm [shape: f32[2,3,16,16], index: 2, kind: input, shape index: {}]
  %s3 = inlined_call_operand.vmem [shape: f32[32,16], index: 3, kind: input, shape index: {}]
  %s4 = inlined_call_operand.vmem [shape: f32[16,32], index: 4, kind: input, shape index: {}]
  %s5 = inlined_call_operand.hbm [shape: f32[2,3,32,32], index: 5, kind: output, shape index: {}]
  %s6 = sld [smem:[#allocation0]]
  $region65: #{tpu_custom_call.1} parent=0
    _
  %s8 = ssub.s32 1, %s6
  %s9 = scalar_select 0, %s8, %s6
  $region1: #{tpu_custom_call.1} parent=0
    #allocation2 [shape = 'u8[1024]{0}', space=smem, size = 0x400, scoped, tag = 'input window, operand 0, single buffered']
    #allocation3 [shape = 's32[2]{0}', space=sflag, size = 0x8, scoped, tag = 'scoped memory for tpu_custom_call.1']
    #allocation4 [shape = 's32[2]{0}', space=sflag, size = 0x8, scoped, tag = 'scoped memory for tpu_custom_call.1']
    #allocation5 [shape = 's32[2]{0}', space=sflag, size = 0x8, scoped, tag = 'scoped memory for tpu_custom_call.1']
    #allocation6 [shape = 'u8[65536]{0}', space=vmem, size = 0x10000, scoped, tag = 'input window, operand 1']
    #allocation7 [shape = 'u8[49152]{0}', space=vmem, size = 0xc000, scoped, tag = 'input window, operand 2']
    #allocation8 [shape = 's32[2]{0}', space=sflag, size = 0x8, scoped, tag = 'scoped memory for tpu_custom_call.1']
    #allocation9 [shape = 'u8[98304]{0}', space=vmem, size = 0x18000, scoped, tag = 'output window, operand 0']
    %10 = vsyncpa [#allocation5], 0
    %11 = vsyncpa [#allocation3], 0
    %s12 = scalar_lea.sflag [#allocation3], 1
    %13 = vsyncpa %s12, 0
    %14 = vsyncpa [#allocation8], 0
    %s15 = scalar_lea.sflag [#allocation8], 1
    %16 = vsyncpa %s15, 0
    %17 = vsyncpa [#allocation4], 0
    %s18 = scalar_lea.sflag [#allocation4], 1
    %19 = vsyncpa %s18, 0
    loop: start=0, step=1, limit=4
    $region2: #{tpu_custom_call.1} parent=1 // loop_pre_header
      _
    $region3: #{tpu_custom_call.1} parent=1 // loop_header
      %s21 = sphi 0, %s25
      %p22 = scmp.ge.s32.totalorder %s21, 4
      %s29 = sphi 0, %s29
      %s31 = sphi 0, %s29
      %s32 = sphi 0, %s31
      %s46 = sphi 0, %s32
      %s52 = sphi 0, %s54
      %s55 = sphi 0, %s52
      %s56 = sphi 0, %s55
      %s72 = sphi 0, %s56
      %s78 = sphi 0, %s80
      %s81 = sphi 0, %s78
      %s82 = sphi 0, %s81
      %s98 = sphi 0, %s82
      %s102 = sphi 0, %s102
      %s104 = sphi 0, %s102
      %s105 = sphi 0, %s104
      %s119 = sphi 0, %s105
      %s123 = sphi 0, %s123
      %s125 = sphi 0, %s123
      %s126 = sphi 0, %s125
      %s140 = sphi 0, %s126
      %s146 = sphi 0, %s148
      %s149 = sphi 0, %s146
      %s150 = sphi 0, %s149
      %s166 = sphi 0, %s150
    $region4: #{tpu_custom_call.1} parent=1 // loop_header_branch
      %24 = sbr.rel (%p22) target = $region8
    $region5: #{tpu_custom_call.1} parent=1 // loop_body
      %s26 = ssub.s32 %s21, 1
      %s27 = ssub.s32 %s21, 2
      %s28 = sadd.s32 %s21, 1
      %s30 = sadd.s32 %s29, 1
      %p33 = scmp.eq.s32.totalorder %s21, 1
      %p34 = scmp.ne.s32.totalorder %s29, %s31
      %p35 = scmp.eq.s32.totalorder %s21, 0
      %p36 = por %p34, %p35
      %p37 = scmp.ne.s32.totalorder %s29, %s31
      %p38 = scmp.eq.s32.totalorder %s26, 1
      %p39 = por %p37, %p38
      %p40 = scmp.ne.s32.totalorder %s31, %s32
      %p41 = scmp.eq.s32.totalorder %s26, 0
      %p42 = por %p40, %p41
      %p43 = scmp.ne.s32.totalorder %s31, %s32
      %p44 = scmp.eq.s32.totalorder %s27, 1
      %p45 = por %p43, %p44
      %p47 = scmp.ne.s32.totalorder %s32, %s46
      %p48 = scmp.eq.s32.totalorder %s27, 0
      %p49 = por %p47, %p48
      %s50 = ssub.s32 %s21, %s28
      %p51 = scmp.eq.s32.totalorder %s50, 0
      %s53 = sadd.s32 %s52, 1
      %s54 = scalar_select %p51, %s52, %s53
      %p57 = pneg %p51
      %p58 = scmp.eq.s32.totalorder %s21, 1
      %p59 = por %p57, %p58
      %p60 = scmp.ne.s32.totalorder %s52, %s55
      %p61 = scmp.eq.s32.totalorder %s21, 0
      %p62 = por %p60, %p61
      %p63 = scmp.ne.s32.totalorder %s52, %s55
      %p64 = scmp.eq.s32.totalorder %s26, 1
      %p65 = por %p63, %p64
      %p66 = scmp.ne.s32.totalorder %s55, %s56
      %p67 = scmp.eq.s32.totalorder %s26, 0
      %p68 = por %p66, %p67
      %p69 = scmp.ne.s32.totalorder %s55, %s56
      %p70 = scmp.eq.s32.totalorder %s27, 1
      %p71 = por %p69, %p70
      %p73 = scmp.ne.s32.totalorder %s56, %s72
      %p74 = scmp.eq.s32.totalorder %s27, 0
      %p75 = por %p73, %p74
      %s76 = ssub.s32 %s21, %s28
      %p77 = scmp.eq.s32.totalorder %s76, 0
      %s79 = sadd.s32 %s78, 1
      %s80 = scalar_select %p77, %s78, %s79
      %p83 = pneg %p77
      %p84 = scmp.eq.s32.totalorder %s21, 1
      %p85 = por %p83, %p84
      %p86 = scmp.ne.s32.totalorder %s78, %s81
      %p87 = scmp.eq.s32.totalorder %s21, 0
      %p88 = por %p86, %p87
      %p89 = scmp.ne.s32.totalorder %s78, %s81
      %p90 = scmp.eq.s32.totalorder %s26, 1
      %p91 = por %p89, %p90
      %p92 = scmp.ne.s32.totalorder %s81, %s82
      %p93 = scmp.eq.s32.totalorder %s26, 0
      %p94 = por %p92, %p93
      %p95 = scmp.ne.s32.totalorder %s81, %s82
      %p96 = scmp.eq.s32.totalorder %s27, 1
      %p97 = por %p95, %p96
      %p99 = scmp.ne.s32.totalorder %s82, %s98
      %p100 = scmp.eq.s32.totalorder %s27, 0
      %p101 = por %p99, %p100
      %s103 = sadd.s32 %s102, 1
      %p106 = scmp.eq.s32.totalorder %s21, 1
      %p107 = scmp.ne.s32.totalorder %s102, %s104
      %p108 = scmp.eq.s32.totalorder %s21, 0
      %p109 = por %p107, %p108
      %p110 = scmp.ne.s32.totalorder %s102, %s104
      %p111 = scmp.eq.s32.totalorder %s26, 1
      %p112 = por %p110, %p111
      %p113 = scmp.ne.s32.totalorder %s104, %s105
      %p114 = scmp.eq.s32.totalorder %s26, 0
      %p115 = por %p113, %p114
      %p116 = scmp.ne.s32.totalorder %s104, %s105
      %p117 = scmp.eq.s32.totalorder %s27, 1
      %p118 = por %p116, %p117
      %p120 = scmp.ne.s32.totalorder %s105, %s119
      %p121 = scmp.eq.s32.totalorder %s27, 0
      %p122 = por %p120, %p121
      %s124 = sadd.s32 %s123, 1
      %p127 = scmp.eq.s32.totalorder %s21, 1
      %p128 = scmp.ne.s32.totalorder %s123, %s125
      %p129 = scmp.eq.s32.totalorder %s21, 0
      %p130 = por %p128, %p129
      %p131 = scmp.ne.s32.totalorder %s123, %s125
      %p132 = scmp.eq.s32.totalorder %s26, 1
      %p133 = por %p131, %p132
      %p134 = scmp.ne.s32.totalorder %s125, %s126
      %p135 = scmp.eq.s32.totalorder %s26, 0
      %p136 = por %p134, %p135
      %p137 = scmp.ne.s32.totalorder %s125, %s126
      %p138 = scmp.eq.s32.totalorder %s27, 1
      %p139 = por %p137, %p138
      %p141 = scmp.ne.s32.totalorder %s126, %s140
      %p142 = scmp.eq.s32.totalorder %s27, 0
      %p143 = por %p141, %p142
      %s144 = ssub.s32 %s21, %s28
      %p145 = scmp.eq.s32.totalorder %s144, 0
      %s147 = sadd.s32 %s146, 1
      %s148 = scalar_select %p145, %s146, %s147
      %p151 = pneg %p145
      %p152 = scmp.eq.s32.totalorder %s21, 1
      %p153 = por %p151, %p152
      %p154 = scmp.ne.s32.totalorder %s146, %s149
      %p155 = scmp.eq.s32.totalorder %s21, 0
      %p156 = por %p154, %p155
      %p157 = scmp.ne.s32.totalorder %s146, %s149
      %p158 = scmp.eq.s32.totalorder %s26, 1
      %p159 = por %p157, %p158
      %p160 = scmp.ne.s32.totalorder %s149, %s150
      %p161 = scmp.eq.s32.totalorder %s26, 0
      %p162 = por %p160, %p161
      %p163 = scmp.ne.s32.totalorder %s149, %s150
      %p164 = scmp.eq.s32.totalorder %s27, 1
      %p165 = por %p163, %p164
      %p167 = scmp.ne.s32.totalorder %s150, %s166
      %p168 = scmp.eq.s32.totalorder %s27, 0
      %p169 = por %p167, %p168
      %p170 = scmp.le.s32.totalorder 1, %s21
      %p171 = scmp.lt.s32.totalorder %s21, 3
      %p172 = pnand %p170, %p171
      %p173 = pneg %p172
      // Predicated region
      $region9: #{tpu_custom_call.1} parent=5 // pred_check
        _
      $region10: #{tpu_custom_call.1} parent=5 // pred_check_branch
        %175 = sbr.rel (%p172) target = $region12
      $region11: #{tpu_custom_call.1} parent=5 // pred_region
        %s176 = ssub.s32 %s21, 1
        // Predicated region
        $region13: #{tpu_custom_call.1} parent=11 // pred_check
          %p177 = pneg %p42
        $region14: #{tpu_custom_call.1} parent=11 // pred_check_branch
          %179 = sbr.rel (%p177) target = $region16
        $region15: #{tpu_custom_call.1} parent=11 // pred_region
          %181 = vsyncadd [#allocation5], 0
          %s183 = sshll.u32 %s0, 4
          %s184 = int_to_ptr.vmem [resolvable:$true] %s183
          %186 = dma.vmem_to_smem %s184, 32, [#allocation2], [#allocation5]
        $region16: #{tpu_custom_call.1} parent=11 // pred_fallthru
          _
        // Predicated region
        $region17: #{tpu_custom_call.1} parent=11 // pred_check
          %p187 = pneg %p115
        $region18: #{tpu_custom_call.1} parent=11 // pred_check_branch
          %189 = sbr.rel (%p187) target = $region20
        $region19: #{tpu_custom_call.1} parent=11 // pred_region
          _
        $region20: #{tpu_custom_call.1} parent=11 // pred_fallthru
          _
        // Predicated region
        $region21: #{tpu_custom_call.1} parent=11 // pred_check
          %p190 = pneg %p136
        $region22: #{tpu_custom_call.1} parent=11 // pred_check_branch
          %192 = sbr.rel (%p190) target = $region24
        $region23: #{tpu_custom_call.1} parent=11 // pred_region
          _
        $region24: #{tpu_custom_call.1} parent=11 // pred_fallthru
          _
      $region12: #{tpu_custom_call.1} parent=5 // pred_fallthru
        _
      %p193 = scmp.lt.s32.totalorder %s21, 2
      // Predicated region
      $region25: #{tpu_custom_call.1} parent=5 // pred_check
        %p194 = pneg %p193
      $region26: #{tpu_custom_call.1} parent=5 // pred_check_branch
        %196 = sbr.rel (%p194) target = $region28
      $region27: #{tpu_custom_call.1} parent=5 // pred_region
        // Predicated region
        $region29: #{tpu_custom_call.1} parent=27 // pred_check
          %p197 = pneg %p62
        $region30: #{tpu_custom_call.1} parent=27 // pred_check_branch
          %199 = sbr.rel (%p197) target = $region32
        $region31: #{tpu_custom_call.1} parent=27 // pred_region
          %s200 = sand.u32 %s52, 1
          %s201 = scalar_lea.sflag [#allocation3], %s200
          %s202 = sand.u32 %s52, 1
          %s203 = smul.addr %s202, 64
          %s204 = scalar_lea.vmem [#allocation6], %s203
          %206 = vsyncadd %s201, 0
          %s207 = smul.addr %s21, 8
          %s208 = smul.addr %s207, 8
          %s209 = scalar_lea.hbm %s1, %s208
          %s210 = sshll.u32 %s209, 4
          %s211 = int_to_ptr.hbm [resolvable:$true] %s210
          %s212 = sshll.u32 %s204, 4
          %s213 = int_to_ptr.vmem [resolvable:$true] %s212
          %218 = dma.hbm_to_vmem [thread:$0]  %s211, 1024, %s213, %s201, 128, 128, 8
        $region32: #{tpu_custom_call.1} parent=27 // pred_fallthru
          _
        // Predicated region
        $region33: #{tpu_custom_call.1} parent=27 // pred_check
          %p219 = pneg %p88
        $region34: #{tpu_custom_call.1} parent=27 // pred_check_branch
          %221 = sbr.rel (%p219) target = $region36
        $region35: #{tpu_custom_call.1} parent=27 // pred_region
          %s222 = sand.u32 %s78, 1
          %s223 = scalar_lea.sflag [#allocation8], %s222
          %s224 = sand.u32 %s78, 1
          %s225 = smul.addr %s224, 48
          %s226 = scalar_lea.vmem [#allocation7], %s225
          %228 = vsyncadd %s223, 0
          %s229 = smul.addr %s21, 6
          %s230 = smul.addr %s229, 8
          %s231 = scalar_lea.hbm %s2, %s230
          %s232 = sshll.u32 %s231, 4
          %s233 = int_to_ptr.hbm [resolvable:$true] %s232
          %s234 = sshll.u32 %s226, 4
          %s235 = int_to_ptr.vmem [resolvable:$true] %s234
          %240 = dma.hbm_to_vmem [thread:$0]  %s233, 768, %s235, %s223, 128, 128, 8
        $region36: #{tpu_custom_call.1} parent=27 // pred_fallthru
          _
      $region28: #{tpu_custom_call.1} parent=5 // pred_fallthru
        _
      %p241 = scmp.le.s32.totalorder 1, %s21
      %p242 = scmp.lt.s32.totalorder %s21, 3
      %p243 = pnand %p241, %p242
      %p244 = pneg %p243
      // Predicated region
      $region37: #{tpu_custom_call.1} parent=5 // pred_check
        _
      $region38: #{tpu_custom_call.1} parent=5 // pred_check_branch
        %246 = sbr.rel (%p243) target = $region40
      $region39: #{tpu_custom_call.1} parent=5 // pred_region
        %s247 = ssub.s32 %s21, 1
        // Predicated region
        $region41: #{tpu_custom_call.1} parent=39 // pred_check
          %p248 = pneg %p42
        $region42: #{tpu_custom_call.1} parent=39 // pred_check_branch
          %250 = sbr.rel (%p248) target = $region44
        $region43: #{tpu_custom_call.1} parent=39 // pred_region
          %252 = dma.done [#allocation5], 32
        $region44: #{tpu_custom_call.1} parent=39 // pred_fallthru
          _
        %s253 = sand.u32 %s55, 1
        %s254 = scalar_lea.sflag [#allocation3], %s253
        %s255 = sand.u32 %s55, 1
        %s256 = smul.addr %s255, 64
        %s257 = scalar_lea.vmem [#allocation6], %s256
        // Predicated region
        $region45: #{tpu_custom_call.1} parent=39 // pred_check
          %p258 = pneg %p68
        $region46: #{tpu_custom_call.1} parent=39 // pred_check_branch
          %260 = sbr.rel (%p258) target = $region48
        $region47: #{tpu_custom_call.1} parent=39 // pred_region
          %262 = dma.done %s254, 1024
        $region48: #{tpu_custom_call.1} parent=39 // pred_fallthru
          _
        %s263 = sand.u32 %s81, 1
        %s264 = scalar_lea.sflag [#allocation8], %s263
        %s265 = sand.u32 %s81, 1
        %s266 = smul.addr %s265, 48
        %s267 = scalar_lea.vmem [#allocation7], %s266
        // Predicated region
        $region49: #{tpu_custom_call.1} parent=39 // pred_check
          %p268 = pneg %p94
        $region50: #{tpu_custom_call.1} parent=39 // pred_check_branch
          %270 = sbr.rel (%p268) target = $region52
        $region51: #{tpu_custom_call.1} parent=39 // pred_region
          %272 = dma.done %s264, 768
        $region52: #{tpu_custom_call.1} parent=39 // pred_fallthru
          _
        %273 = sfence
        %p274 = pneg %p42
        %p275 = pneg %p39
        %s276 = sand.u32 %s55, 1
        %s277 = scalar_lea.sflag [#allocation3], %s276
        %s278 = sand.u32 %s55, 1
        %s279 = smul.addr %s278, 64
        %s280 = scalar_lea.vmem [#allocation6], %s279
        %p281 = pneg %p68
        %p282 = pneg %p65
        %s283 = sand.u32 %s81, 1
        %s284 = scalar_lea.sflag [#allocation8], %s283
        %s285 = sand.u32 %s81, 1
        %s286 = smul.addr %s285, 48
        %s287 = scalar_lea.vmem [#allocation7], %s286
        %p288 = pneg %p94
        %p289 = pneg %p91
        %p290 = pneg %p115
        %p291 = pneg %p112
        %p292 = pneg %p136
        %p293 = pneg %p133
        %p294 = pneg %p162
        %p295 = pneg %p159
        %s296 = sand.u32 %s149, 1
        %s297 = scalar_lea.sflag [#allocation4], %s296
        %s298 = sand.u32 %s149, 1
        %s299 = smul.addr %s298, 96
        %s300 = scalar_lea.vmem [#allocation9], %s299
        %v301 = vld [vmem:[%s3] sm:$0xff]
        %v302 = vld [vmem:[%s3 + $0x8] sm:$0xff]
        %v303 = vld [vmem:[%s3 + $0x10] sm:$0xff]
        %v304 = vld [vmem:[%s3 + $0x18] sm:$0xff]
        %v305 = vld [vmem:[%s4] sm:$0xff]
        %v306 = vld [vmem:[%s4 + $0x8] sm:$0xff]
        %v307 = vld [vmem:[%s267] sm:$0xff]
        %v308 = vld [vmem:[%s267 + $0x8] sm:$0xff]
        %s309 = smul.u32 %s26, 128
        %s310 = sld [smem:[#allocation2 + %s309]]
        %v311 = vld [vmem:[%s257] sm:$0xff]
        %v312 = vld [vmem:[%s257 + $0x8] sm:$0xff]
        %v313 = vstv %s310
        %v314 = vmul.f32 %v313, %v311
        %v315 = vmul.f32 %v313, %v312
        %v316 = vadd.f32 %v307, %v314
        %v317 = vadd.f32 %v308, %v315
        %s318 = sadd.s32 %s309, 1
        %s319 = sld [smem:[#allocation2 + %s318]]
        %s320 = scalar_lea.vmem %s257, 16 [#allocation6]
        %v321 = vld [vmem:[%s320] sm:$0xff]
        %v322 = vld [vmem:[%s320 + $0x8] sm:$0xff]
        %v323 = vstv %s319
        %v324 = vmul.f32 %v323, %v321
        %v325 = vmul.f32 %v323, %v322
        %v326 = vadd.f32 %v316, %v324
        %v327 = vadd.f32 %v317, %v325
        %s328 = sadd.s32 %s309, 2
        %s329 = sld [smem:[#allocation2 + %s328]]
        %s330 = scalar_lea.vmem %s257, 32 [#allocation6]
        %v331 = vld [vmem:[%s330] sm:$0xff]
        %v332 = vld [vmem:[%s330 + $0x8] sm:$0xff]
        %v333 = vstv %s329
        %v334 = vmul.f32 %v333, %v331
        %v335 = vmul.f32 %v333, %v332
        %v336 = vadd.f32 %v326, %v334
        %v337 = vadd.f32 %v327, %v335
        %s338 = sadd.s32 %s309, 3
        %s339 = sld [smem:[#allocation2 + %s338]]
        %s340 = scalar_lea.vmem %s257, 48 [#allocation6]
        %v341 = vld [vmem:[%s340] sm:$0xff]
        %v342 = vld [vmem:[%s340 + $0x8] sm:$0xff]
        %v343 = vstv %s339
        %v344 = vmul.f32 %v343, %v341
        %v345 = vmul.f32 %v343, %v342
        %v346 = vadd.f32 %v336, %v344
        %v347 = vadd.f32 %v337, %v345
        %vm348 = vcmask 130048
        %v350 = vsel %vm348, %v301, 0
        %v353 = vsel %vm348, %v302, 0
        %v356 = vsel %vm348, %v303, 0
        %v359 = vsel %vm348, %v304, 0
        %361 = vmatpush.msra.mxu0 0.0
        %362 = vmatpush.msra.mxu0 0.0
        %363 = vmatpush.msra.mxu0 0.0
        %364 = vmatpush.msra.mxu0 0.0
        %365 = vmatpush.msra.mxu0 0.0
        %366 = vmatpush.msra.mxu0 0.0
        %367 = vmatpush.msra.mxu0 0.0
        %368 = vmatpush.msra.mxu0 0.0
        %369 = vmatpush.msra.mxu0 0.0
        %370 = vmatpush.msra.mxu0 0.0
        %371 = vmatpush.msra.mxu0 0.0
        %372 = vmatpush.msra.mxu0 0.0
        %373 = vmatpush.msra.mxu0 0.0
        %374 = vmatpush.msra.mxu0 0.0
        %375 = vmatpush.msra.mxu0 %v347
        %376 = vmatpush.msra.mxu0 %v346
        %377 = vmatmul.f32.gmra.mxu0 %v350
        %v378 = vpop.f32.mrf.mxu0
        %v379 = vadd.f32 0.0, %v378
        %380 = vmatmul.f32.gmra.mxu0 %v353
        %v381 = vpop.f32.mrf.mxu0
        %v382 = vadd.f32 0.0, %v381
        %383 = vmatmul.f32.gmra.mxu0 %v356
        %v384 = vpop.f32.mrf.mxu0
        %v385 = vadd.f32 0.0, %v384
        %386 = vmatmul.f32.gmra.mxu0 %v359
        %v387 = vpop.f32.mrf.mxu0
        %v388 = vadd.f32 0.0, %v387
        %389 = vdwg.mxu0
        %v391 = vsel %vm348, %v379, 0
        %v394 = vsel %vm348, %v382, 0
        %v397 = vsel %vm348, %v385, 0
        %v400 = vsel %vm348, %v388, 0
        %402 = vmatpush.msra.mxu0 0.0
        %403 = vmatpush.msra.mxu0 0.0
        %404 = vmatpush.msra.mxu0 0.0
        %405 = vmatpush.msra.mxu0 0.0
        %406 = vmatpush.msra.mxu0 0.0
        %407 = vmatpush.msra.mxu0 0.0
        %408 = vmatpush.msra.mxu0 0.0
        %409 = vmatpush.msra.mxu0 0.0
        %410 = vmatpush.msra.mxu0 0.0
        %411 = vmatpush.msra.mxu0 0.0
        %412 = vmatpush.msra.mxu0 0.0
        %413 = vmatpush.msra.mxu0 0.0
        %414 = vmatpush.msra.mxu0 0.0
        %415 = vmatpush.msra.mxu0 0.0
        %416 = vmatpush.msra.mxu0 %v306
        %417 = vmatpush.msra.mxu0 %v305
        %418 = vmatmul.f32.gmra.mxu0 %v391
        %v419 = vpop.f32.mrf.mxu0
        %v420 = vadd.f32 0.0, %v419
        %421 = vmatmul.f32.gmra.mxu0 %v394
        %v422 = vpop.f32.mrf.mxu0
        %v423 = vadd.f32 0.0, %v422
        %424 = vmatmul.f32.gmra.mxu0 %v397
        %v425 = vpop.f32.mrf.mxu0
        %v426 = vadd.f32 0.0, %v425
        %427 = vmatmul.f32.gmra.mxu0 %v400
        %v428 = vpop.f32.mrf.mxu0
        %v429 = vadd.f32 0.0, %v428
        %430 = vdwg.mxu0
        %vm431 = vcmask 261120
        %432 = vst.msk [vmem:[%s300] sm:$0xff] %vm431, %v420
        %433 = vst.msk [vmem:[%s300 + $0x8] sm:$0xff] %vm431, %v423
        %434 = vst.msk [vmem:[%s300 + $0x10] sm:$0xff] %vm431, %v426
        %435 = vst.msk [vmem:[%s300 + $0x18] sm:$0xff] %vm431, %v429
        %s436 = scalar_lea.vmem %s267, 16 [#allocation7]
        %v437 = vld [vmem:[%s436] sm:$0xff]
        %v438 = vld [vmem:[%s436 + $0x8] sm:$0xff]
        %s439 = sadd.s32 %s309, 4
        %s440 = sld [smem:[#allocation2 + %s439]]
        %v441 = vld [vmem:[%s257] sm:$0xff]
        %v442 = vld [vmem:[%s257 + $0x8] sm:$0xff]
        %v443 = vstv %s440
        %v444 = vmul.f32 %v443, %v441
        %v445 = vmul.f32 %v443, %v442
        %v446 = vadd.f32 %v437, %v444
        %v447 = vadd.f32 %v438, %v445
        %s448 = sadd.s32 %s309, 5
        %s449 = sld [smem:[#allocation2 + %s448]]
        %v450 = vld [vmem:[%s320] sm:$0xff]
        %v451 = vld [vmem:[%s320 + $0x8] sm:$0xff]
        %v452 = vstv %s449
        %v453 = vmul.f32 %v452, %v450
        %v454 = vmul.f32 %v452, %v451
        %v455 = vadd.f32 %v446, %v453
        %v456 = vadd.f32 %v447, %v454
        %s457 = sadd.s32 %s309, 6
        %s458 = sld [smem:[#allocation2 + %s457]]
        %v459 = vld [vmem:[%s330] sm:$0xff]
        %v460 = vld [vmem:[%s330 + $0x8] sm:$0xff]
        %v461 = vstv %s458
        %v462 = vmul.f32 %v461, %v459
        %v463 = vmul.f32 %v461, %v460
        %v464 = vadd.f32 %v455, %v462
        %v465 = vadd.f32 %v456, %v463
        %s466 = sadd.s32 %s309, 7
        %s467 = sld [smem:[#allocation2 + %s466]]
        %v468 = vld [vmem:[%s340] sm:$0xff]
        %v469 = vld [vmem:[%s340 + $0x8] sm:$0xff]
        %v470 = vstv %s467
        %v471 = vmul.f32 %v470, %v468
        %v472 = vmul.f32 %v470, %v469
        %v473 = vadd.f32 %v464, %v471
        %v474 = vadd.f32 %v465, %v472
        %475 = vmatpush.msra.mxu0 0.0
        %476 = vmatpush.msra.mxu0 0.0
        %477 = vmatpush.msra.mxu0 0.0
        %478 = vmatpush.msra.mxu0 0.0
        %479 = vmatpush.msra.mxu0 0.0
        %480 = vmatpush.msra.mxu0 0.0
        %481 = vmatpush.msra.mxu0 0.0
        %482 = vmatpush.msra.mxu0 0.0
        %483 = vmatpush.msra.mxu0 0.0
        %484 = vmatpush.msra.mxu0 0.0
        %485 = vmatpush.msra.mxu0 0.0
        %486 = vmatpush.msra.mxu0 0.0
        %487 = vmatpush.msra.mxu0 0.0
        %488 = vmatpush.msra.mxu0 0.0
        %489 = vmatpush.msra.mxu0 %v474
        %490 = vmatpush.msra.mxu0 %v473
        %491 = vmatmul.f32.gmra.mxu0 %v350
        %v492 = vpop.f32.mrf.mxu0
        %v493 = vadd.f32 0.0, %v492
        %494 = vmatmul.f32.gmra.mxu0 %v353
        %v495 = vpop.f32.mrf.mxu0
        %v496 = vadd.f32 0.0, %v495
        %497 = vmatmul.f32.gmra.mxu0 %v356
        %v498 = vpop.f32.mrf.mxu0
        %v499 = vadd.f32 0.0, %v498
        %500 = vmatmul.f32.gmra.mxu0 %v359
        %v501 = vpop.f32.mrf.mxu0
        %v502 = vadd.f32 0.0, %v501
        %503 = vdwg.mxu0
        %v505 = vsel %vm348, %v493, 0
        %v508 = vsel %vm348, %v496, 0
        %v511 = vsel %vm348, %v499, 0
        %v514 = vsel %vm348, %v502, 0
        %516 = vmatpush.msra.mxu0 0.0
        %517 = vmatpush.msra.mxu0 0.0
        %518 = vmatpush.msra.mxu0 0.0
        %519 = vmatpush.msra.mxu0 0.0
        %520 = vmatpush.msra.mxu0 0.0
        %521 = vmatpush.msra.mxu0 0.0
        %522 = vmatpush.msra.mxu0 0.0
        %523 = vmatpush.msra.mxu0 0.0
        %524 = vmatpush.msra.mxu0 0.0
        %525 = vmatpush.msra.mxu0 0.0
        %526 = vmatpush.msra.mxu0 0.0
        %527 = vmatpush.msra.mxu0 0.0
        %528 = vmatpush.msra.mxu0 0.0
        %529 = vmatpush.msra.mxu0 0.0
        %530 = vmatpush.msra.mxu0 %v306
        %531 = vmatpush.msra.mxu0 %v305
        %532 = vmatmul.f32.gmra.mxu0 %v505
        %v533 = vpop.f32.mrf.mxu0
        %v534 = vadd.f32 0.0, %v533
        %535 = vmatmul.f32.gmra.mxu0 %v508
        %v536 = vpop.f32.mrf.mxu0
        %v537 = vadd.f32 0.0, %v536
        %538 = vmatmul.f32.gmra.mxu0 %v511
        %v539 = vpop.f32.mrf.mxu0
        %v540 = vadd.f32 0.0, %v539
        %541 = vmatmul.f32.gmra.mxu0 %v514
        %v542 = vpop.f32.mrf.mxu0
        %v543 = vadd.f32 0.0, %v542
        %544 = vdwg.mxu0
        %s545 = scalar_lea.vmem %s300, 32 [#allocation9]
        %546 = vst.msk [vmem:[%s545] sm:$0xff] %vm431, %v534
        %547 = vst.msk [vmem:[%s545 + $0x8] sm:$0xff] %vm431, %v537
        %548 = vst.msk [vmem:[%s545 + $0x10] sm:$0xff] %vm431, %v540
        %549 = vst.msk [vmem:[%s545 + $0x18] sm:$0xff] %vm431, %v543
        %s550 = scalar_lea.vmem %s267, 32 [#allocation7]
        %v551 = vld [vmem:[%s550] sm:$0xff]
        %v552 = vld [vmem:[%s550 + $0x8] sm:$0xff]
        %s553 = sadd.s32 %s309, 8
        %s554 = sld [smem:[#allocation2 + %s553]]
        %v555 = vld [vmem:[%s257] sm:$0xff]
        %v556 = vld [vmem:[%s257 + $0x8] sm:$0xff]
        %v557 = vstv %s554
        %v558 = vmul.f32 %v557, %v555
        %v559 = vmul.f32 %v557, %v556
        %v560 = vadd.f32 %v551, %v558
        %v561 = vadd.f32 %v552, %v559
        %s562 = sadd.s32 %s309, 9
        %s563 = sld [smem:[#allocation2 + %s562]]
        %v564 = vld [vmem:[%s320] sm:$0xff]
        %v565 = vld [vmem:[%s320 + $0x8] sm:$0xff]
        %v566 = vstv %s563
        %v567 = vmul.f32 %v566, %v564
        %v568 = vmul.f32 %v566, %v565
        %v569 = vadd.f32 %v560, %v567
        %v570 = vadd.f32 %v561, %v568
        %s571 = sadd.s32 %s309, 10
        %s572 = sld [smem:[#allocation2 + %s571]]
        %v573 = vld [vmem:[%s330] sm:$0xff]
        %v574 = vld [vmem:[%s330 + $0x8] sm:$0xff]
        %v575 = vstv %s572
        %v576 = vmul.f32 %v575, %v573
        %v577 = vmul.f32 %v575, %v574
        %v578 = vadd.f32 %v569, %v576
        %v579 = vadd.f32 %v570, %v577
        %s580 = sadd.s32 %s309, 11
        %s581 = sld [smem:[#allocation2 + %s580]]
        %v582 = vld [vmem:[%s340] sm:$0xff]
        %v583 = vld [vmem:[%s340 + $0x8] sm:$0xff]
        %v584 = vstv %s581
        %v585 = vmul.f32 %v584, %v582
        %v586 = vmul.f32 %v584, %v583
        %v587 = vadd.f32 %v578, %v585
        %v588 = vadd.f32 %v579, %v586
        %589 = vmatpush.msra.mxu0 0.0
        %590 = vmatpush.msra.mxu0 0.0
        %591 = vmatpush.msra.mxu0 0.0
        %592 = vmatpush.msra.mxu0 0.0
        %593 = vmatpush.msra.mxu0 0.0
        %594 = vmatpush.msra.mxu0 0.0
        %595 = vmatpush.msra.mxu0 0.0
        %596 = vmatpush.msra.mxu0 0.0
        %597 = vmatpush.msra.mxu0 0.0
        %598 = vmatpush.msra.mxu0 0.0
        %599 = vmatpush.msra.mxu0 0.0
        %600 = vmatpush.msra.mxu0 0.0
        %601 = vmatpush.msra.mxu0 0.0
        %602 = vmatpush.msra.mxu0 0.0
        %603 = vmatpush.msra.mxu0 %v588
        %604 = vmatpush.msra.mxu0 %v587
        %605 = vmatmul.f32.gmra.mxu0 %v350
        %v606 = vpop.f32.mrf.mxu0
        %v607 = vadd.f32 0.0, %v606
        %608 = vmatmul.f32.gmra.mxu0 %v353
        %v609 = vpop.f32.mrf.mxu0
        %v610 = vadd.f32 0.0, %v609
        %611 = vmatmul.f32.gmra.mxu0 %v356
        %v612 = vpop.f32.mrf.mxu0
        %v613 = vadd.f32 0.0, %v612
        %614 = vmatmul.f32.gmra.mxu0 %v359
        %v615 = vpop.f32.mrf.mxu0
        %v616 = vadd.f32 0.0, %v615
        %617 = vdwg.mxu0
        %v619 = vsel %vm348, %v607, 0
        %v622 = vsel %vm348, %v610, 0
        %v625 = vsel %vm348, %v613, 0
        %v628 = vsel %vm348, %v616, 0
        %630 = vmatpush.msra.mxu0 0.0
        %631 = vmatpush.msra.mxu0 0.0
        %632 = vmatpush.msra.mxu0 0.0
        %633 = vmatpush.msra.mxu0 0.0
        %634 = vmatpush.msra.mxu0 0.0
        %635 = vmatpush.msra.mxu0 0.0
        %636 = vmatpush.msra.mxu0 0.0
        %637 = vmatpush.msra.mxu0 0.0
        %638 = vmatpush.msra.mxu0 0.0
        %639 = vmatpush.msra.mxu0 0.0
        %640 = vmatpush.msra.mxu0 0.0
        %641 = vmatpush.msra.mxu0 0.0
        %642 = vmatpush.msra.mxu0 0.0
        %643 = vmatpush.msra.mxu0 0.0
        %644 = vmatpush.msra.mxu0 %v306
        %645 = vmatpush.msra.mxu0 %v305
        %646 = vmatmul.f32.gmra.mxu0 %v619
        %v647 = vpop.f32.mrf.mxu0
        %v648 = vadd.f32 0.0, %v647
        %649 = vmatmul.f32.gmra.mxu0 %v622
        %v650 = vpop.f32.mrf.mxu0
        %v651 = vadd.f32 0.0, %v650
        %652 = vmatmul.f32.gmra.mxu0 %v625
        %v653 = vpop.f32.mrf.mxu0
        %v654 = vadd.f32 0.0, %v653
        %655 = vmatmul.f32.gmra.mxu0 %v628
        %v656 = vpop.f32.mrf.mxu0
        %v657 = vadd.f32 0.0, %v656
        %658 = vdwg.mxu0
        %s659 = scalar_lea.vmem %s300, 64 [#allocation9]
        %660 = vst.msk [vmem:[%s659] sm:$0xff] %vm431, %v648
        %661 = vst.msk [vmem:[%s659 + $0x8] sm:$0xff] %vm431, %v651
        %662 = vst.msk [vmem:[%s659 + $0x10] sm:$0xff] %vm431, %v654
        %663 = vst.msk [vmem:[%s659 + $0x18] sm:$0xff] %vm431, %v657
        %s664 = sand.u32 %s149, 1
        %s665 = scalar_lea.sflag [#allocation4], %s664
        %s666 = sand.u32 %s149, 1
        %s667 = smul.addr %s666, 96
        %s668 = scalar_lea.vmem [#allocation9], %s667
        // Predicated region
        $region53: #{tpu_custom_call.1} parent=39 // pred_check
          %p669 = pneg %p159
        $region54: #{tpu_custom_call.1} parent=39 // pred_check_branch
          %671 = sbr.rel (%p669) target = $region56
        $region55: #{tpu_custom_call.1} parent=39 // pred_region
          %673 = vsyncadd %s665, 0
          %s674 = smul.addr %s26, 12
          %s675 = smul.addr %s674, 8
          %s676 = scalar_lea.hbm %s5, %s675
          %s677 = sshll.u32 %s668, 4
          %s678 = int_to_ptr.vmem [resolvable:$true] %s677
          %s679 = sshll.u32 %s676, 4
          %s680 = int_to_ptr.hbm [resolvable:$true] %s679
          %685 = dma.vmem_to_hbm [thread:$0]  %s678, 1536, %s680, %s665, 128, 128, 8
        $region56: #{tpu_custom_call.1} parent=39 // pred_fallthru
          _
      $region40: #{tpu_custom_call.1} parent=5 // pred_fallthru
        _
      %p686 = scmp.le.s32.totalorder 2, %s21
      // Predicated region
      $region57: #{tpu_custom_call.1} parent=5 // pred_check
        %p687 = pneg %p686
      $region58: #{tpu_custom_call.1} parent=5 // pred_check_branch
        %689 = sbr.rel (%p687) target = $region60
      $region59: #{tpu_custom_call.1} parent=5 // pred_region
        %s690 = ssub.s32 %s21, 2
        // Predicated region
        $region61: #{tpu_custom_call.1} parent=59 // pred_check
          %p691 = pneg %p165
        $region62: #{tpu_custom_call.1} parent=59 // pred_check_branch
          %693 = sbr.rel (%p691) target = $region64
        $region63: #{tpu_custom_call.1} parent=59 // pred_region
          %s694 = sand.u32 %s150, 1
          %s695 = scalar_lea.sflag [#allocation4], %s694
          %s696 = sand.u32 %s150, 1
          %s697 = smul.addr %s696, 96
          %s698 = scalar_lea.vmem [#allocation9], %s697
          %700 = dma.done %s695, 1536
        $region64: #{tpu_custom_call.1} parent=59 // pred_fallthru
          _
      $region60: #{tpu_custom_call.1} parent=5 // pred_fallthru
        _
    $region6: #{tpu_custom_call.1} parent=1 // loop_footer
      %s25 = sadd.s32 1, %s21
    $region7: #{tpu_custom_call.1} parent=1 // loop_footer_branch
      %20 = sbr.rel target = $region3
    $region8: #{tpu_custom_call.1} parent=1 // loop_exit
      _
    %701 = vsyncpa [#allocation3], 1
    %s702 = scalar_lea.sflag [#allocation3], 1
    %703 = vsyncpa %s702, 1
    %704 = vsyncpa [#allocation8], 1
    %s705 = scalar_lea.sflag [#allocation8], 1
    %706 = vsyncpa %s705, 1
    %707 = vsyncpa [#allocation4], 1
    %s708 = scalar_lea.sflag [#allocation4], 1
    %709 = vsyncpa %s708, 1
    %710 = vsyncpa [#allocation5], 1
    %s711 = scalar_lea.sflag [#allocation5], 1
    %712 = vsyncpa %s711, 1

</llo_original>
